<compile_context>
chip_gen: v7x
topology: tpu7x:2x2x1
jax: 0.10.0
libtpu: 0.0.40
codegen_flags: <defaults>
</compile_context>

<pallas_src>
import numpy as np
from functools import partial

import jax
import jax.numpy as jnp
from jax.experimental import pallas as pl
from jax.experimental.pallas import tpu as pltpu


# --------------------------------------------------------------------------
# Deterministic configuration (synthetic, small)
# --------------------------------------------------------------------------
CONF = dict(
    img_size=(64, 64),
    anchors=[[(10.0, 14.0), (23.0, 27.0), (37.0, 58.0)]],  # one scale (i = 0)
    classes=3,
    ignore_threshold=0.5,
    batch_size=2,
    obj_scale=1.0,
    noobj_scale=100.0,
)

NEG_LIM = -100.0   # PyTorch BCELoss clamps log terms at -100
NUM_OUT_ROWS = 8   # [x, y, w, h, conf_obj, cls, conf_noobj, pad]


# --------------------------------------------------------------------------
# Host-side target construction.  Faithful to the PyTorch build_targets loops
# (including the swapped gi/gj indexing of noobj_mask for the IoU-ignore
# rule), but writes directly into ONE contiguous (B, A, attrs+2, H, W) slab:
#   rows 0..3        : tx, ty, tw, th
#   row  4           : tconf
#   rows 5..attrs-1  : tcls (one-hot)
#   row  attrs       : obj mask   (float 0/1)
#   row  attrs+1     : noobj mask (float 0/1)
# TODO(synk): this tiny, data-dependent per-box scatter stays in host NumPy —
# there is no clean Pallas equivalent worth writing for a handful of boxes.
# --------------------------------------------------------------------------
def build_targets_packed(target, scale_anchors, w, h, ignore_threshold,
                         num_anchors, classes):
    bs_n, nt, _ = target.shape
    attrs = 5 + classes
    tgt = np.zeros((bs_n, num_anchors, attrs + 2, h, w), np.float32)
    tgt[:, :, attrs + 1] = 1.0                      # noobj mask starts at 1

    tb = np.array(target, np.float32).copy()
    tb[..., 0:-1:2] *= w
    tb[..., 1:-1:2] *= h
    anchors_np = np.array(scale_anchors, np.float32)

    for bs in range(bs_n):
        for tg in range(nt):
            if tb[bs, tg, :-1].sum() == 0:
                continue
            gx, gy, gw, gh = tb[bs, tg, :4]
            gi = int(gx)
            gj = int(gy)
            gi = 1 if gi == 0 else gi
            gj = 1 if gj == 0 else gj
            # jaccard of (0,0,gw,gh) vs (0,0,aw,ah)  ==  wh-IoU
            inter = np.minimum(gw, anchors_np[:, 0]) * np.minimum(gh, anchors_np[:, 1])
            union = gw * gh + 1e-16 + anchors_np[:, 0] * anchors_np[:, 1] - inter
            ious = inter / union
            # NOTE: original code indexes [gi, gj] here (swapped) — reproduced.
            tgt[bs, ious > ignore_threshold, attrs + 1, gi, gj] = 0.0
            best_n = int(np.argmax(ious))
            tgt[bs, best_n, attrs, gj, gi] = 1.0        # obj
            tgt[bs, best_n, attrs + 1, gj, gi] = 0.0    # noobj
            tgt[bs, best_n, 0, gj, gi] = gx - gi
            tgt[bs, best_n, 1, gj, gi] = gy - gj
            tgt[bs, best_n, 2, gj, gi] = np.log(gw / anchors_np[best_n][0] + 1e-16)
            tgt[bs, best_n, 3, gj, gi] = np.log(gh / anchors_np[best_n][1] + 1e-16)
            tgt[bs, best_n, 4, gj, gi] = 1.0            # tconf
            tgt[bs, best_n, 5 + int(tb[bs, tg, -1]), gj, gi] = 1.0
    return tgt


# --------------------------------------------------------------------------
# Pallas kernel.  Grid = (B,); one step handles all anchors for one batch
# element and writes the fully reduced per-batch term sums.
#
# Output rows (shape (NUM_OUT_ROWS, 1)):
#   0: sum obj*(sig(x)-tx)^2      1: sum obj*(sig(y)-ty)^2
#   2: sum obj*(w-tw)^2           3: sum obj*(h-th)^2
#   4: sum obj*BCE(conf)          5: sum obj*BCE(cls)  (all classes)
#   6: sum noobj*BCE(conf)        7: pad (0)
# --------------------------------------------------------------------------
def yolo_loss_kernel(pred_ref, tgt_ref, out_ref):
    attrs = pred_ref.shape[1]          # 5 + classes

    obj = tgt_ref[:, attrs:attrs + 1, :]          # (A, 1, HW)
    noobj = tgt_ref[:, attrs + 1:attrs + 2, :]    # (A, 1, HW)

    # ---- box terms: sigmoid only on x/y rows; w/h stay raw ----
    xy_sq = obj * (jax.nn.sigmoid(pred_ref[:, 0:2, :]) - tgt_ref[:, 0:2, :]) ** 2
    wh_sq = obj * (pred_ref[:, 2:4, :] - tgt_ref[:, 2:4, :]) ** 2

    # ---- BCE in logits form for conf + classes ----
    #   -log(sigmoid(z))   = softplus(-z)   -> clamp at 100
    #   -log(1-sigmoid(z)) = softplus(z)    -> clamp at 100
    z = pred_ref[:, 4:, :]                         # (A, 1+classes, HW)
    t = tgt_ref[:, 4:attrs, :]                     # (A, 1+classes, HW)
    sp_pos = jnp.maximum(z, 0.0) + jnp.log(1.0 + jnp.exp(-jnp.abs(z)))  # softplus(z)
    sp_neg = sp_pos - z                                                 # softplus(-z)
    sp_pos = jnp.minimum(sp_pos, -NEG_LIM)
    sp_neg = jnp.minimum(sp_neg, -NEG_LIM)
    bce = t * sp_neg + (1.0 - t) * sp_pos          # (A, 1+classes, HW)

    conf_obj = obj * bce[:, 0:1, :]                # (A, 1, HW)
    conf_noobj = noobj * bce[:, 0:1, :]            # (A, 1, HW)
    cls_obj = obj * bce[:, 1:, :]                  # (A, classes, HW)

    # ---- anchor-axis sums (plain VPU adds over vreg blocks) ----
    xy_l = jnp.sum(xy_sq, axis=0)                  # (2, HW)
    wh_l = jnp.sum(wh_sq, axis=0)                  # (2, HW)
    co_l = jnp.sum(conf_obj, axis=0)               # (1, HW)
    cn_l = jnp.sum(conf_noobj, axis=0)             # (1, HW)
    cl_l = jnp.sum(jnp.sum(cls_obj, axis=0), axis=0, keepdims=True)   # (1, HW)

    # ---- lane reduction (XLU) straight into the tiny per-batch output ----
    out_ref[0:2, :] = jnp.sum(xy_l, axis=1, keepdims=True)
    out_ref[2:4, :] = jnp.sum(wh_l, axis=1, keepdims=True)
    out_ref[4:5, :] = jnp.sum(co_l, axis=1, keepdims=True)
    out_ref[5:6, :] = jnp.sum(cl_l, axis=1, keepdims=True)
    out_ref[6:7, :] = jnp.sum(cn_l, axis=1, keepdims=True)
    out_ref[7:8, :] = jnp.zeros((1, 1), jnp.float32)


def _reduce_terms(pred_v, tgtm):
    b, a, attrs, hw = pred_v.shape
    return pl.pallas_call(
        yolo_loss_kernel,
        out_shape=jax.ShapeDtypeStruct((b, NUM_OUT_ROWS, 1), jnp.float32),
        grid_spec=pltpu.PrefetchScalarGridSpec(
            num_scalar_prefetch=0,
            grid=(b,),
            in_specs=[
                pl.BlockSpec((None, a, attrs, hw), lambda bi: (bi, 0, 0, 0)),
                pl.BlockSpec((None, a, attrs + 2, hw), lambda bi: (bi, 0, 0, 0)),
            ],
            out_specs=pl.BlockSpec((None, NUM_OUT_ROWS, 1), lambda bi: (bi, 0, 0)),
        ),
        # Batch is independent per step -> "parallel"; on v7x the two
        # TensorCores can each take one batch slab.  v5e/v6e: no-op.
        compiler_params=pltpu.CompilerParams(
            dimension_semantics=("parallel",)),
    )(pred_v, tgtm)


@partial(jax.jit, static_argnames=("classes", "obj_scale", "noobj_scale"))
def _device_loss(pred_v, tgtm, n_obj, n_noobj, *, classes, obj_scale, noobj_scale):
    terms = _reduce_terms(pred_v, tgtm)            # (B, 8, 1)
    s = jnp.sum(terms[:, :, 0], axis=0)            # (8,) — tiny batch sum
    # NOTE: like the PyTorch module, n_obj == 0 yields inf/NaN (no guard).
    loss_x = s[0] / n_obj
    loss_y = s[1] / n_obj
    loss_w = s[2] / n_obj
    loss_h = s[3] / n_obj
    loss_conf = obj_scale * s[4] / n_obj + noobj_scale * s[6] / n_noobj
    loss_cls = s[5] / (n_obj * classes)
    return loss_x + loss_y + loss_w + loss_h + loss_conf + loss_cls


# --------------------------------------------------------------------------
# Forward pass (YOlOLoss.forward)
# --------------------------------------------------------------------------
def yolo_loss_forward(pred, targets, conf=CONF, scale_idx=0):
    anchors = conf["anchors"][scale_idx]
    classes = conf["classes"]
    num_anchors = len(anchors)
    bbox_attrs = 5 + classes

    batch_size, _, pred_im_h, pred_im_w = pred.shape
    stride_h = conf["img_size"][0] / pred_im_h
    stride_w = conf["img_size"][1] / pred_im_w
    scale_anchors = [(aw / stride_w, ah / stride_h) for aw, ah in anchors]
    hw = pred_im_h * pred_im_w

    # ---- host-side target scatter (tiny, data-dependent) ----
    tgt_full = build_targets_packed(
        np.asarray(targets), scale_anchors, pred_im_w, pred_im_h,
        conf["ignore_threshold"], num_anchors, classes)
    n_obj = np.float32(tgt_full[:, :, bbox_attrs].sum())
    n_noobj = np.float32(tgt_full[:, :, bbox_attrs + 1].sum())

    # pred in NCHW is already attribute-major / cell-minor: this reshape is a
    # pure view of (B, A*attrs, H, W) — no transpose, no pad, no device copy.
    pred_v = jnp.asarray(pred, jnp.float32).reshape(
        batch_size, num_anchors, bbox_attrs, hw)
    # Single fused target+mask slab -> one H2D copy, one DMA stream per step.
    tgtm = jnp.asarray(tgt_full.reshape(batch_size, num_anchors, bbox_attrs + 2, hw))

    return _device_loss(pred_v, tgtm, n_obj, n_noobj,
                        classes=classes,
                        obj_scale=conf["obj_scale"],
                        noobj_scale=conf["noobj_scale"])


# --------------------------------------------------------------------------
# Pure-NumPy reference (mirrors the PyTorch math) for a correctness check.
# --------------------------------------------------------------------------
def reference_loss(pred, targets, conf=CONF, scale_idx=0):
    anchors = conf["anchors"][scale_idx]
    classes = conf["classes"]
    num_anchors = len(anchors)
    attrs = 5 + classes
    B, _, H, W = pred.shape
    stride_h = conf["img_size"][0] / H
    stride_w = conf["img_size"][1] / W
    scale_anchors = [(aw / stride_w, ah / stride_h) for aw, ah in anchors]

    tgt = build_targets_packed(np.asarray(targets), scale_anchors, W, H,
                               conf["ignore_threshold"], num_anchors, classes)
    om = tgt[:, :, attrs].astype(bool)
    nm = tgt[:, :, attrs + 1].astype(bool)
    tx, ty = tgt[:, :, 0], tgt[:, :, 1]
    tw, th = tgt[:, :, 2], tgt[:, :, 3]
    tconf = tgt[:, :, 4]
    tcls = np.transpose(tgt[:, :, 5:attrs], (0, 1, 3, 4, 2))   # (B,A,H,W,C)

    p = np.asarray(pred, np.float32).reshape(B, num_anchors, attrs, H, W)
    p = np.transpose(p, (0, 1, 3, 4, 2))
    sig = lambda v: 1.0 / (1.0 + np.exp(-v))
    x, y = sig(p[..., 0]), sig(p[..., 1])
    w_, h_ = p[..., 2], p[..., 3]
    c = sig(p[..., 4])
    pcls = sig(p[..., 5:])

    clog = lambda v: np.maximum(np.log(v), NEG_LIM)
    bce = lambda pr, t: np.mean(-(t * clog(pr) + (1 - t) * clog(1 - pr)))
    mse = lambda pr, t: np.mean((pr - t) ** 2)

    loss_x = mse(x[om], tx[om])
    loss_y = mse(y[om], ty[om])
    loss_w = mse(w_[om], tw[om])
    loss_h = mse(h_[om], th[om])
    loss_conf = (conf["obj_scale"] * bce(c[om], tconf[om])
                 + conf["noobj_scale"] * bce(c[nm], tconf[nm]))
    loss_cls = bce(pcls[om], tcls[om])
    return loss_x + loss_y + loss_w + loss_h + loss_conf + loss_cls


# --------------------------------------------------------------------------
if __name__ == "__main__":
    key = jax.random.PRNGKey(0)
    B = CONF["batch_size"]
    A = len(CONF["anchors"][0])
    classes = CONF["classes"]
    attrs = 5 + classes
    H = W = 8
    n_targets = 4

    k_pred, k_xy, k_wh, k_cls = jax.random.split(key, 4)
    pred = jax.random.normal(k_pred, (B, A * attrs, H, W), dtype=jnp.float32)

    # targets: (B, n_targets, 5) = normalized (x, y, w, h, class)
    t_xy = jax.random.uniform(k_xy, (B, n_targets, 2), minval=0.1, maxval=0.9)
    t_wh = jax.random.uniform(k_wh, (B, n_targets, 2), minval=0.1, maxval=0.5)
    t_cls = jax.random.randint(k_cls, (B, n_targets, 1), 0, classes).astype(jnp.float32)
    targets = jnp.concatenate([t_xy, t_wh, t_cls], axis=-1)

    total = yolo_loss_forward(pred, targets)
    total = jax.block_until_ready(total)

    ref = reference_loss(np.asarray(pred), np.asarray(targets))
    assert np.allclose(np.asarray(total), ref, rtol=1e-3, atol=1e-3), (float(total), ref)
    print("KERNEL_OK")
</pallas_src>

<mosaic_0001>
module attributes {stable_mosaic.version = 11 : i64} {
  func.func @yolo_loss_kernel(%arg0: i32, %arg1: memref<1x3x8x64xf32, #tpu.memory_space<vmem>>, %arg2: memref<1x3x10x64xf32, #tpu.memory_space<vmem>>, %arg3: memref<1x8x1xf32, #tpu.memory_space<vmem>>) attributes {dimension_semantics = [#tpu.dimension_semantics<parallel>], iteration_bounds = array<i64: 2>, scalar_prefetch = 0 : i64, scratch_operands = 0 : i64, tpu.core_type = #tpu.core_type<tc>, window_params = [{transform_indices = @transform_0, window_bounds = array<i64: 1, 3, 8, 64>}, {transform_indices = @transform_1, window_bounds = array<i64: 1, 3, 10, 64>}, {transform_indices = @transform_2, window_bounds = array<i64: 1, 8, 1>}]} {
    %c0 = arith.constant 0 : index
    %c0_0 = arith.constant 0 : index
    %c8 = arith.constant 8 : index
    %c0_1 = arith.constant 0 : index
    %0 = vector.load %arg2[%c0, %c0_0, %c8, %c0_1] : memref<1x3x10x64xf32, #tpu.memory_space<vmem>>, vector<1x3x1x64xf32>
    %1 = vector.shape_cast %0 : vector<1x3x1x64xf32> to vector<3x1x64xf32>
    %c0_2 = arith.constant 0 : index
    %c0_3 = arith.constant 0 : index
    %c9 = arith.constant 9 : index
    %c0_4 = arith.constant 0 : index
    %2 = vector.load %arg2[%c0_2, %c0_3, %c9, %c0_4] : memref<1x3x10x64xf32, #tpu.memory_space<vmem>>, vector<1x3x1x64xf32>
    %3 = vector.shape_cast %2 : vector<1x3x1x64xf32> to vector<3x1x64xf32>
    %c0_5 = arith.constant 0 : index
    %c0_6 = arith.constant 0 : index
    %c0_7 = arith.constant 0 : index
    %c0_8 = arith.constant 0 : index
    %4 = vector.load %arg1[%c0_5, %c0_6, %c0_7, %c0_8] : memref<1x3x8x64xf32, #tpu.memory_space<vmem>>, vector<1x3x2x64xf32>
    %5 = vector.shape_cast %4 : vector<1x3x2x64xf32> to vector<3x2x64xf32>
    %6 = arith.negf %5 : vector<3x2x64xf32>
    %7 = math.exp %6 : vector<3x2x64xf32>
    %cst = arith.constant 1.000000e+00 : f32
    %8 = vector.broadcast %cst : f32 to vector<3x2x64xf32>
    %9 = arith.addf %8, %7 : vector<3x2x64xf32>
    %10 = arith.divf %8, %9 : vector<3x2x64xf32>
    %c0_9 = arith.constant 0 : index
    %c0_10 = arith.constant 0 : index
    %c0_11 = arith.constant 0 : index
    %c0_12 = arith.constant 0 : index
    %11 = vector.load %arg2[%c0_9, %c0_10, %c0_11, %c0_12] : memref<1x3x10x64xf32, #tpu.memory_space<vmem>>, vector<1x3x2x64xf32>
    %12 = vector.shape_cast %11 : vector<1x3x2x64xf32> to vector<3x2x64xf32>
    %13 = arith.subf %10, %12 : vector<3x2x64xf32>
    %14 = arith.mulf %13, %13 : vector<3x2x64xf32>
    %15 = vector.broadcast %1 : vector<3x1x64xf32> to vector<3x2x64xf32>
    %16 = arith.mulf %15, %14 : vector<3x2x64xf32>
    %c0_13 = arith.constant 0 : index
    %c0_14 = arith.constant 0 : index
    %c2 = arith.constant 2 : index
    %c0_15 = arith.constant 0 : index
    %17 = vector.load %arg1[%c0_13, %c0_14, %c2, %c0_15] : memref<1x3x8x64xf32, #tpu.memory_space<vmem>>, vector<1x3x2x64xf32>
    %18 = vector.shape_cast %17 : vector<1x3x2x64xf32> to vector<3x2x64xf32>
    %c0_16 = arith.constant 0 : index
    %c0_17 = arith.constant 0 : index
    %c2_18 = arith.constant 2 : index
    %c0_19 = arith.constant 0 : index
    %19 = vector.load %arg2[%c0_16, %c0_17, %c2_18, %c0_19] : memref<1x3x10x64xf32, #tpu.memory_space<vmem>>, vector<1x3x2x64xf32>
    %20 = vector.shape_cast %19 : vector<1x3x2x64xf32> to vector<3x2x64xf32>
    %21 = arith.subf %18, %20 : vector<3x2x64xf32>
    %22 = arith.mulf %21, %21 : vector<3x2x64xf32>
    %23 = vector.broadcast %1 : vector<3x1x64xf32> to vector<3x2x64xf32>
    %24 = arith.mulf %23, %22 : vector<3x2x64xf32>
    %c0_20 = arith.constant 0 : index
    %c0_21 = arith.constant 0 : index
    %c4 = arith.constant 4 : index
    %c0_22 = arith.constant 0 : index
    %25 = vector.load %arg1[%c0_20, %c0_21, %c4, %c0_22] : memref<1x3x8x64xf32, #tpu.memory_space<vmem>>, vector<1x3x4x64xf32>
    %26 = vector.shape_cast %25 : vector<1x3x4x64xf32> to vector<3x4x64xf32>
    %c0_23 = arith.constant 0 : index
    %c0_24 = arith.constant 0 : index
    %c4_25 = arith.constant 4 : index
    %c0_26 = arith.constant 0 : index
    %27 = vector.load %arg2[%c0_23, %c0_24, %c4_25, %c0_26] : memref<1x3x10x64xf32, #tpu.memory_space<vmem>>, vector<1x3x4x64xf32>
    %28 = vector.shape_cast %27 : vector<1x3x4x64xf32> to vector<3x4x64xf32>
    %cst_27 = arith.constant 0.000000e+00 : f32
    %29 = vector.broadcast %cst_27 : f32 to vector<3x4x64xf32>
    %30 = arith.maximumf %26, %29 : vector<3x4x64xf32>
    %31 = math.absf %26 : vector<3x4x64xf32>
    %cst_28 = arith.constant 0.000000e+00 : f32
    %32 = vector.broadcast %cst_28 : f32 to vector<3x4x64xf32>
    %33 = arith.subf %32, %31 : vector<3x4x64xf32>
    %34 = math.exp %33 : vector<3x4x64xf32>
    %cst_29 = arith.constant 1.000000e+00 : f32
    %35 = vector.broadcast %cst_29 : f32 to vector<3x4x64xf32>
    %36 = arith.addf %35, %34 : vector<3x4x64xf32>
    %37 = math.log %36 : vector<3x4x64xf32>
    %38 = arith.addf %30, %37 : vector<3x4x64xf32>
    %39 = arith.subf %38, %26 : vector<3x4x64xf32>
    %cst_30 = arith.constant 1.000000e+02 : f32
    %40 = vector.broadcast %cst_30 : f32 to vector<3x4x64xf32>
    %41 = arith.minimumf %38, %40 : vector<3x4x64xf32>
    %cst_31 = arith.constant 1.000000e+02 : f32
    %42 = vector.broadcast %cst_31 : f32 to vector<3x4x64xf32>
    %43 = arith.minimumf %39, %42 : vector<3x4x64xf32>
    %44 = arith.mulf %28, %43 : vector<3x4x64xf32>
    %cst_32 = arith.constant 1.000000e+00 : f32
    %45 = vector.broadcast %cst_32 : f32 to vector<3x4x64xf32>
    %46 = arith.subf %45, %28 : vector<3x4x64xf32>
    %47 = arith.mulf %46, %41 : vector<3x4x64xf32>
    %48 = arith.addf %44, %47 : vector<3x4x64xf32>
    %49 = vector.extract_strided_slice %48 {offsets = [0, 0, 0], sizes = [3, 1, 64], strides = [1, 1, 1]} : vector<3x4x64xf32> to vector<3x1x64xf32>
    %50 = arith.mulf %1, %49 : vector<3x1x64xf32>
    %51 = vector.extract_strided_slice %48 {offsets = [0, 0, 0], sizes = [3, 1, 64], strides = [1, 1, 1]} : vector<3x4x64xf32> to vector<3x1x64xf32>
    %52 = arith.mulf %3, %51 : vector<3x1x64xf32>
    %53 = vector.extract_strided_slice %48 {offsets = [0, 1, 0], sizes = [3, 3, 64], strides = [1, 1, 1]} : vector<3x4x64xf32> to vector<3x3x64xf32>
    %54 = vector.broadcast %1 : vector<3x1x64xf32> to vector<3x3x64xf32>
    %55 = arith.mulf %54, %53 : vector<3x3x64xf32>
    %cst_33 = arith.constant dense<0.000000e+00> : vector<2x64xf32>
    %56 = vector.multi_reduction <add>, %16, %cst_33 [0] : vector<3x2x64xf32> to vector<2x64xf32>
    %cst_34 = arith.constant dense<0.000000e+00> : vector<2x64xf32>
    %57 = vector.multi_reduction <add>, %24, %cst_34 [0] : vector<3x2x64xf32> to vector<2x64xf32>
    %cst_35 = arith.constant dense<0.000000e+00> : vector<1x64xf32>
    %58 = vector.multi_reduction <add>, %50, %cst_35 [0] : vector<3x1x64xf32> to vector<1x64xf32>
    %cst_36 = arith.constant dense<0.000000e+00> : vector<1x64xf32>
    %59 = vector.multi_reduction <add>, %52, %cst_36 [0] : vector<3x1x64xf32> to vector<1x64xf32>
    %cst_37 = arith.constant dense<0.000000e+00> : vector<3x64xf32>
    %60 = vector.multi_reduction <add>, %55, %cst_37 [0] : vector<3x3x64xf32> to vector<3x64xf32>
    %cst_38 = arith.constant dense<0.000000e+00> : vector<64xf32>
    %61 = vector.multi_reduction <add>, %60, %cst_38 [0] : vector<3x64xf32> to vector<64xf32>
    %62 = vector.shape_cast %61 : vector<64xf32> to vector<1x64xf32>
    %cst_39 = arith.constant dense<0.000000e+00> : vector<2xf32>
    %63 = vector.multi_reduction <add>, %56, %cst_39 [1] : vector<2x64xf32> to vector<2xf32>
    %64 = vector.shape_cast %63 : vector<2xf32> to vector<2x1xf32>
    %c0_40 = arith.constant 0 : index
    %c0_41 = arith.constant 0 : index
    %c0_42 = arith.constant 0 : index
    %65 = vector.load %arg3[%c0_40, %c0_41, %c0_42] : memref<1x8x1xf32, #tpu.memory_space<vmem>>, vector<1x2x1xf32>
    %66 = vector.shape_cast %65 : vector<1x2x1xf32> to vector<2x1xf32>
    %67 = vector.shape_cast %64 : vector<2x1xf32> to vector<1x2x1xf32>
    tpu.vector_store %arg3[%c0_40, %c0_41, %c0_42], %67 {strides = array<i32>} : memref<1x8x1xf32, #tpu.memory_space<vmem>>, vector<1x2x1xf32>,
    %cst_43 = arith.constant dense<0.000000e+00> : vector<2xf32>
    %68 = vector.multi_reduction <add>, %57, %cst_43 [1] : vector<2x64xf32> to vector<2xf32>
    %69 = vector.shape_cast %68 : vector<2xf32> to vector<2x1xf32>
    %c0_44 = arith.constant 0 : index
    %c2_45 = arith.constant 2 : index
    %c0_46 = arith.constant 0 : index
    %70 = vector.load %arg3[%c0_44, %c2_45, %c0_46] : memref<1x8x1xf32, #tpu.memory_space<vmem>>, vector<1x2x1xf32>
    %71 = vector.shape_cast %70 : vector<1x2x1xf32> to vector<2x1xf32>
    %72 = vector.shape_cast %69 : vector<2x1xf32> to vector<1x2x1xf32>
    tpu.vector_store %arg3[%c0_44, %c2_45, %c0_46], %72 {strides = array<i32>} : memref<1x8x1xf32, #tpu.memory_space<vmem>>, vector<1x2x1xf32>,
    %cst_47 = arith.constant dense<0.000000e+00> : vector<1xf32>
    %73 = vector.multi_reduction <add>, %58, %cst_47 [1] : vector<1x64xf32> to vector<1xf32>
    %74 = vector.shape_cast %73 : vector<1xf32> to vector<1x1xf32>
    %c0_48 = arith.constant 0 : index
    %c4_49 = arith.constant 4 : index
    %c0_50 = arith.constant 0 : index
    %75 = vector.load %arg3[%c0_48, %c4_49, %c0_50] : memref<1x8x1xf32, #tpu.memory_space<vmem>>, vector<1x1x1xf32>
    %76 = vector.shape_cast %75 : vector<1x1x1xf32> to vector<1x1xf32>
    %77 = vector.shape_cast %74 : vector<1x1xf32> to vector<1x1x1xf32>
    tpu.vector_store %arg3[%c0_48, %c4_49, %c0_50], %77 {strides = array<i32>} : memref<1x8x1xf32, #tpu.memory_space<vmem>>, vector<1x1x1xf32>,
    %cst_51 = arith.constant dense<0.000000e+00> : vector<1xf32>
    %78 = vector.multi_reduction <add>, %62, %cst_51 [1] : vector<1x64xf32> to vector<1xf32>
    %79 = vector.shape_cast %78 : vector<1xf32> to vector<1x1xf32>
    %c0_52 = arith.constant 0 : index
    %c5 = arith.constant 5 : index
    %c0_53 = arith.constant 0 : index
    %80 = vector.load %arg3[%c0_52, %c5, %c0_53] : memref<1x8x1xf32, #tpu.memory_space<vmem>>, vector<1x1x1xf32>
    %81 = vector.shape_cast %80 : vector<1x1x1xf32> to vector<1x1xf32>
    %82 = vector.shape_cast %79 : vector<1x1xf32> to vector<1x1x1xf32>
    tpu.vector_store %arg3[%c0_52, %c5, %c0_53], %82 {strides = array<i32>} : memref<1x8x1xf32, #tpu.memory_space<vmem>>, vector<1x1x1xf32>,
    %cst_54 = arith.constant dense<0.000000e+00> : vector<1xf32>
    %83 = vector.multi_reduction <add>, %59, %cst_54 [1] : vector<1x64xf32> to vector<1xf32>
    %84 = vector.shape_cast %83 : vector<1xf32> to vector<1x1xf32>
    %c0_55 = arith.constant 0 : index
    %c6 = arith.constant 6 : index
    %c0_56 = arith.constant 0 : index
    %85 = vector.load %arg3[%c0_55, %c6, %c0_56] : memref<1x8x1xf32, #tpu.memory_space<vmem>>, vector<1x1x1xf32>
    %86 = vector.shape_cast %85 : vector<1x1x1xf32> to vector<1x1xf32>
    %87 = vector.shape_cast %84 : vector<1x1xf32> to vector<1x1x1xf32>
    tpu.vector_store %arg3[%c0_55, %c6, %c0_56], %87 {strides = array<i32>} : memref<1x8x1xf32, #tpu.memory_space<vmem>>, vector<1x1x1xf32>,
    %cst_57 = arith.constant 0.000000e+00 : f32
    %88 = vector.broadcast %cst_57 : f32 to vector<1x1xf32>
    %c0_58 = arith.constant 0 : index
    %c7 = arith.constant 7 : index
    %c0_59 = arith.constant 0 : index
    %89 = vector.load %arg3[%c0_58, %c7, %c0_59] : memref<1x8x1xf32, #tpu.memory_space<vmem>>, vector<1x1x1xf32>
    %90 = vector.shape_cast %89 : vector<1x1x1xf32> to vector<1x1xf32>
    %91 = vector.shape_cast %88 : vector<1x1xf32> to vector<1x1x1xf32>
    tpu.vector_store %arg3[%c0_58, %c7, %c0_59], %91 {strides = array<i32>} : memref<1x8x1xf32, #tpu.memory_space<vmem>>, vector<1x1x1xf32>,
    return
  }
  func.func @transform_0(%arg0: i32) -> (i32, i32, i32, i32) {
    %c0_i32 = arith.constant 0 : i32
    %c0_i32_0 = arith.constant 0 : i32
    %c0_i32_1 = arith.constant 0 : i32
    %c0_i32_2 = arith.constant 0 : i32
    return %arg0, %c0_i32, %c0_i32_0, %c0_i32_1 : i32, i32, i32, i32
  }
  func.func @transform_1(%arg0: i32) -> (i32, i32, i32, i32) {
    %c0_i32 = arith.constant 0 : i32
    %c0_i32_0 = arith.constant 0 : i32
    %c0_i32_1 = arith.constant 0 : i32
    %c0_i32_2 = arith.constant 0 : i32
    return %arg0, %c0_i32, %c0_i32_0, %c0_i32_1 : i32, i32, i32, i32
  }
  func.func @transform_2(%arg0: i32) -> (i32, i32, i32) {
    %c0_i32 = arith.constant 0 : i32
    %c0_i32_0 = arith.constant 0 : i32
    %c0_i32_1 = arith.constant 0 : i32
    return %arg0, %c0_i32, %c0_i32_0 : i32, i32, i32
  }
}

</mosaic_0001>

<llo_original>
// kernel: _device_loss.1
$region0: #{_device_loss.1}
  #allocation0 [shape = 'u32[]', space=smem, size = 0x4, offset = 0x4, fixed_abs, tag = 'smem constant byte address 0x4 - core index']
  #allocation1 [shape = 'u32[144,128]{1,0:T(1,128)}', space=vmem, size = 0x12000, scoped, tag = 'internal scratch']
  %s0 = inlined_call_operand.vmem [shape: f32[2,3,8,64], index: 0, kind: input, shape index: {}]
  %s1 = inlined_call_operand.vmem [shape: f32[2,3,10,64], index: 1, kind: input, shape index: {}]
  %s2 = inlined_call_operand.vmem [shape: f32[2,8,1], index: 2, kind: output, shape index: {}]
  %s3 = sld [smem:[#allocation0]]
  $region41: #{_device_loss.1} parent=0
    _
  %s5 = ssub.s32 1, %s3
  %s6 = scalar_select 0, %s5, %s3
  loop: start=0, step=1, limit=4
  $region2: #{_device_loss.1} parent=0 // loop_pre_header
    _
  $region3: #{_device_loss.1} parent=0 // loop_header
    %s8 = sphi 0, %s12
    %p9 = scmp.ge.s32.totalorder %s8, 4
    %s18 = sphi 0, %s20
    %s21 = sphi 0, %s18
    %s22 = sphi 0, %s21
    %s38 = sphi 0, %s22
    %s44 = sphi 0, %s46
    %s47 = sphi 0, %s44
    %s48 = sphi 0, %s47
    %s64 = sphi 0, %s48
    %s70 = sphi 0, %s72
    %s73 = sphi 0, %s70
    %s74 = sphi 0, %s73
    %s90 = sphi 0, %s74
  $region4: #{_device_loss.1} parent=0 // loop_header_branch
    %11 = sbr.rel (%p9) target = $region8
  $region5: #{_device_loss.1} parent=0 // loop_body
    %s13 = ssub.s32 %s8, 1
    %s14 = ssub.s32 %s8, 2
    %s15 = sadd.s32 %s8, 1
    %s16 = ssub.s32 %s8, %s15
    %p17 = scmp.eq.s32.totalorder %s16, 0
    %s19 = sadd.s32 %s18, 1
    %s20 = scalar_select %p17, %s18, %s19
    %p23 = pneg %p17
    %p24 = scmp.eq.s32.totalorder %s8, 1
    %p25 = por %p23, %p24
    %p26 = scmp.ne.s32.totalorder %s18, %s21
    %p27 = scmp.eq.s32.totalorder %s8, 0
    %p28 = por %p26, %p27
    %p29 = scmp.ne.s32.totalorder %s18, %s21
    %p30 = scmp.eq.s32.totalorder %s13, 1
    %p31 = por %p29, %p30
    %p32 = scmp.ne.s32.totalorder %s21, %s22
    %p33 = scmp.eq.s32.totalorder %s13, 0
    %p34 = por %p32, %p33
    %p35 = scmp.ne.s32.totalorder %s21, %s22
    %p36 = scmp.eq.s32.totalorder %s14, 1
    %p37 = por %p35, %p36
    %p39 = scmp.ne.s32.totalorder %s22, %s38
    %p40 = scmp.eq.s32.totalorder %s14, 0
    %p41 = por %p39, %p40
    %s42 = ssub.s32 %s8, %s15
    %p43 = scmp.eq.s32.totalorder %s42, 0
    %s45 = sadd.s32 %s44, 1
    %s46 = scalar_select %p43, %s44, %s45
    %p49 = pneg %p43
    %p50 = scmp.eq.s32.totalorder %s8, 1
    %p51 = por %p49, %p50
    %p52 = scmp.ne.s32.totalorder %s44, %s47
    %p53 = scmp.eq.s32.totalorder %s8, 0
    %p54 = por %p52, %p53
    %p55 = scmp.ne.s32.totalorder %s44, %s47
    %p56 = scmp.eq.s32.totalorder %s13, 1
    %p57 = por %p55, %p56
    %p58 = scmp.ne.s32.totalorder %s47, %s48
    %p59 = scmp.eq.s32.totalorder %s13, 0
    %p60 = por %p58, %p59
    %p61 = scmp.ne.s32.totalorder %s47, %s48
    %p62 = scmp.eq.s32.totalorder %s14, 1
    %p63 = por %p61, %p62
    %p65 = scmp.ne.s32.totalorder %s48, %s64
    %p66 = scmp.eq.s32.totalorder %s14, 0
    %p67 = por %p65, %p66
    %s68 = ssub.s32 %s8, %s15
    %p69 = scmp.eq.s32.totalorder %s68, 0
    %s71 = sadd.s32 %s70, 1
    %s72 = scalar_select %p69, %s70, %s71
    %p75 = pneg %p69
    %p76 = scmp.eq.s32.totalorder %s8, 1
    %p77 = por %p75, %p76
    %p78 = scmp.ne.s32.totalorder %s70, %s73
    %p79 = scmp.eq.s32.totalorder %s8, 0
    %p80 = por %p78, %p79
    %p81 = scmp.ne.s32.totalorder %s70, %s73
    %p82 = scmp.eq.s32.totalorder %s13, 1
    %p83 = por %p81, %p82
    %p84 = scmp.ne.s32.totalorder %s73, %s74
    %p85 = scmp.eq.s32.totalorder %s13, 0
    %p86 = por %p84, %p85
    %p87 = scmp.ne.s32.totalorder %s73, %s74
    %p88 = scmp.eq.s32.totalorder %s14, 1
    %p89 = por %p87, %p88
    %p91 = scmp.ne.s32.totalorder %s74, %s90
    %p92 = scmp.eq.s32.totalorder %s14, 0
    %p93 = por %p91, %p92
    %p94 = scmp.le.s32.totalorder 1, %s8
    %p95 = scmp.lt.s32.totalorder %s8, 3
    %p96 = pnand %p94, %p95
    %p97 = pneg %p96
    // Predicated region
    $region9: #{_device_loss.1} parent=5 // pred_check
      _
    $region10: #{_device_loss.1} parent=5 // pred_check_branch
      %99 = sbr.rel (%p96) target = $region12
    $region11: #{_device_loss.1} parent=5 // pred_region
      %s100 = ssub.s32 %s8, 1
    $region12: #{_device_loss.1} parent=5 // pred_fallthru
      _
    %p101 = scmp.lt.s32.totalorder %s8, 2
    // Predicated region
    $region13: #{_device_loss.1} parent=5 // pred_check
      %p102 = pneg %p101
    $region14: #{_device_loss.1} parent=5 // pred_check_branch
      %104 = sbr.rel (%p102) target = $region16
    $region15: #{_device_loss.1} parent=5 // pred_region
      // Predicated region
      $region17: #{_device_loss.1} parent=15 // pred_check
        %p105 = pneg %p28
      $region18: #{_device_loss.1} parent=15 // pred_check_branch
        %107 = sbr.rel (%p105) target = $region20
      $region19: #{_device_loss.1} parent=15 // pred_region
        %p108 = scmp.lt.s32.totalorder %s8, 1
        %s109 = scalar_select %p108, %s8, 1
        %s110 = smul.addr %s109, 3
        %s111 = smul.addr %s110, 8
        %s112 = scalar_lea.vmem %s0, %s111
      $region20: #{_device_loss.1} parent=15 // pred_fallthru
        _
      // Predicated region
      $region21: #{_device_loss.1} parent=15 // pred_check
        %p113 = pneg %p54
      $region22: #{_device_loss.1} parent=15 // pred_check_branch
        %115 = sbr.rel (%p113) target = $region24
      $region23: #{_device_loss.1} parent=15 // pred_region
        %p116 = scmp.lt.s32.totalorder %s8, 1
        %s117 = scalar_select %p116, %s8, 1
        %s118 = smul.addr %s117, 6
        %s119 = smul.addr %s118, 8
        %s120 = scalar_lea.vmem %s1, %s119
      $region24: #{_device_loss.1} parent=15 // pred_fallthru
        _
    $region16: #{_device_loss.1} parent=5 // pred_fallthru
      _
    %p121 = scmp.le.s32.totalorder 1, %s8
    %p122 = scmp.lt.s32.totalorder %s8, 3
    %p123 = pnand %p121, %p122
    %p124 = pneg %p123
    // Predicated region
    $region25: #{_device_loss.1} parent=5 // pred_check
      _
    $region26: #{_device_loss.1} parent=5 // pred_check_branch
      %126 = sbr.rel (%p123) target = $region28
    $region27: #{_device_loss.1} parent=5 // pred_region
      %s127 = ssub.s32 %s8, 1
      %p128 = scmp.lt.s32.totalorder %s13, 1
      %s129 = scalar_select %p128, %s13, 1
      %s130 = smul.addr %s129, 3
      %s131 = smul.addr %s130, 8
      %s132 = scalar_lea.vmem %s0, %s131
      %p133 = pneg %p34
      %p134 = pneg %p31
      %p135 = scmp.lt.s32.totalorder %s13, 1
      %s136 = scalar_select %p135, %s13, 1
      %s137 = smul.addr %s136, 6
      %s138 = smul.addr %s137, 8
      %s139 = scalar_lea.vmem %s1, %s138
      %p140 = pneg %p60
      %p141 = pneg %p57
      %p142 = pneg %p86
      %p143 = pneg %p83
      %p144 = scmp.lt.s32.totalorder %s13, 1
      %s145 = scalar_select %p144, %s13, 1
      %s146 = smul.addr %s145, 8
      %s147 = scalar_lea.vmem %s2, %s146
      %p148 = scmp.lt.s32.totalorder %s13, 1
      %s149 = scalar_select %p148, %s13, 1
      %s150 = smul.addr %s149, 3
      %s151 = smul.addr %s150, 8
      %s152 = scalar_lea.vmem %s0, %s151
      %p153 = scmp.lt.s32.totalorder %s13, 1
      %s154 = scalar_select %p153, %s13, 1
      %s155 = smul.addr %s154, 6
      %s156 = smul.addr %s155, 8
      %s157 = scalar_lea.vmem %s1, %s156
      %p158 = scmp.lt.s32.totalorder %s13, 1
      %s159 = scalar_select %p158, %s13, 1
      %s160 = smul.addr %s159, 8
      %s161 = scalar_lea.vmem %s2, %s160
      %v162 = vld [vmem:[%s157 + $0x8] sm:$0x1]
      %v163 = vld [vmem:[%s157 + $0x18] sm:$0x1]
      %v164 = vld [vmem:[%s157 + $0x28] sm:$0x1]
      %v165 = vld [vmem:[%s157 + $0x9] sm:$0x1]
      %v166 = vld [vmem:[%s157 + $0x19] sm:$0x1]
      %v167 = vld [vmem:[%s157 + $0x29] sm:$0x1]
      %v168 = vld [vmem:[%s152] sm:$0x3]
      %v169 = vld [vmem:[%s152 + $0x8] sm:$0x3]
      %v170 = vld [vmem:[%s152 + $0x10] sm:$0x3]
      %v171 = vxor.u32 %v168, 2147483648
      %v172 = vxor.u32 %v169, 2147483648
      %v173 = vxor.u32 %v170, 2147483648
      %v174 = vmul.f32 %v171, 1.442695
      %v175 = vpow.pop %v174
      %v176 = vmul.f32 %v172, 1.442695
      %v177 = vpow.pop %v176
      %v178 = vmul.f32 %v173, 1.442695
      %v179 = vpow.pop %v178
      %v180 = vadd.f32 %v175, 1.0
      %v181 = vadd.f32 %v177, 1.0
      %v182 = vadd.f32 %v179, 1.0
      %v183 = vrcp.pop %v180
      %v184 = vmul.f32 1.0, %v183
      %v185 = vrcp.pop %v181
      %v186 = vmul.f32 1.0, %v185
      %v187 = vrcp.pop %v182
      %v188 = vmul.f32 1.0, %v187
      %v189 = vld [vmem:[%s157] sm:$0x3]
      %v190 = vld [vmem:[%s157 + $0x10] sm:$0x3]
      %v191 = vld [vmem:[%s157 + $0x20] sm:$0x3]
      %v192 = vsub.f32 %v184, %v189
      %v193 = vsub.f32 %v186, %v190
      %v194 = vsub.f32 %v188, %v191
      %v195 = vmul.f32 %v192, %v192
      %v196 = vmul.f32 %v193, %v193
      %v197 = vmul.f32 %v194, %v194
      %v198 = vlaneseq
      %v199 = vshrl.u32 %v198, 7
      %v200 = vsub.s32 0, %v199
      %v201 = vrot.slane %v162, %v200
      %v202 = vlaneseq
      %v203 = vshrl.u32 %v202, 7
      %v204 = vsub.s32 0, %v203
      %v205 = vrot.slane %v163, %v204
      %v206 = vlaneseq
      %v207 = vshrl.u32 %v206, 7
      %v208 = vsub.s32 0, %v207
      %v209 = vrot.slane %v164, %v208
      %v210 = vmul.f32 %v201, %v195
      %v211 = vmul.f32 %v205, %v196
      %v212 = vmul.f32 %v209, %v197
      %v213 = vld [vmem:[%s152 + $0x2] sm:$0x3]
      %v214 = vld [vmem:[%s152 + $0xa] sm:$0x3]
      %v215 = vld [vmem:[%s152 + $0x12] sm:$0x3]
      %v216 = vld [vmem:[%s157 + $0x2] sm:$0x3]
      %v217 = vld [vmem:[%s157 + $0x12] sm:$0x3]
      %v218 = vld [vmem:[%s157 + $0x22] sm:$0x3]
      %v219 = vsub.f32 %v213, %v216
      %v220 = vsub.f32 %v214, %v217
      %v221 = vsub.f32 %v215, %v218
      %v222 = vmul.f32 %v219, %v219
      %v223 = vmul.f32 %v220, %v220
      %v224 = vmul.f32 %v221, %v221
      %v225 = vmul.f32 %v201, %v222
      %v226 = vmul.f32 %v205, %v223
      %v227 = vmul.f32 %v209, %v224
      %v228 = vld [vmem:[%s152 + $0x4] sm:$0xf]
      %v229 = vld [vmem:[%s152 + $0xc] sm:$0xf]
      %v230 = vld [vmem:[%s152 + $0x14] sm:$0xf]
      %v231 = vld [vmem:[%s157 + $0x4] sm:$0xf]
      %v232 = vld [vmem:[%s157 + $0x14] sm:$0xf]
      %v233 = vld [vmem:[%s157 + $0x24] sm:$0xf]
      %v234 = vmax.f32 %v228, 0.0
      %v235 = vmax.f32 %v229, 0.0
      %v236 = vmax.f32 %v230, 0.0
      %v237 = vand.u32 2147483647, %v228
      %v238 = vand.u32 2147483647, %v229
      %v239 = vand.u32 2147483647, %v230
      %v240 = vsub.f32 0.0, %v237
      %v241 = vsub.f32 0.0, %v238
      %v242 = vsub.f32 0.0, %v239
      %v243 = vmul.f32 %v240, 1.442695
      %v244 = vpow.pop %v243
      %v245 = vmul.f32 %v241, 1.442695
      %v246 = vpow.pop %v245
      %v247 = vmul.f32 %v242, 1.442695
      %v248 = vpow.pop %v247
      %v249 = vadd.f32 %v244, 1.0
      %v250 = vadd.f32 %v246, 1.0
      %v251 = vadd.f32 %v248, 1.0
      %v252 = vlog2.pop %v249
      %v253 = vmul.f32 %v252, 0.6931472
      %v254 = vlog2.pop %v250
      %v255 = vmul.f32 %v254, 0.6931472
      %v256 = vlog2.pop %v251
      %v257 = vmul.f32 %v256, 0.6931472
      %v258 = vadd.f32 %v234, %v253
      %v259 = vadd.f32 %v235, %v255
      %v260 = vadd.f32 %v236, %v257
      %v261 = vsub.f32 %v258, %v228
      %v262 = vsub.f32 %v259, %v229
      %v263 = vsub.f32 %v260, %v230
      %v264 = vmin.f32 %v258, 100.0
      %v265 = vmin.f32 %v259, 100.0
      %v266 = vmin.f32 %v260, 100.0
      %v267 = vmin.f32 %v261, 100.0
      %v268 = vmin.f32 %v262, 100.0
      %v269 = vmin.f32 %v263, 100.0
      %v270 = vmul.f32 %v231, %v267
      %v271 = vmul.f32 %v232, %v268
      %v272 = vmul.f32 %v233, %v269
      %v273 = vsub.f32 1.0, %v231
      %v274 = vsub.f32 1.0, %v232
      %v275 = vsub.f32 1.0, %v233
      %v276 = vmul.f32 %v273, %v264
      %v277 = vmul.f32 %v274, %v265
      %v278 = vmul.f32 %v275, %v266
      %v279 = vadd.f32 %v270, %v276
      %v280 = vadd.f32 %v271, %v277
      %v281 = vadd.f32 %v272, %v278
      %v282 = vmul.f32 %v162, %v279
      %v283 = vmul.f32 %v163, %v280
      %v284 = vmul.f32 %v164, %v281
      %v285 = vmul.f32 %v165, %v279
      %v286 = vmul.f32 %v166, %v280
      %v287 = vmul.f32 %v167, %v281
      %v288 = vmul.f32 %v201, %v279
      %v289 = vmul.f32 %v205, %v280
      %v290 = vmul.f32 %v209, %v281
      %vm291 = vcmask 517120
      %v292 = vsel %vm291, %v210, 0.0
      %v293 = vsel %vm291, %v211, 0.0
      %v294 = vadd.f32 %v292, %v293
      %v295 = vsel %vm291, %v212, 0.0
      %v296 = vadd.f32 %v294, %v295
      %v297 = vsel %vm291, %v225, 0.0
      %v298 = vsel %vm291, %v226, 0.0
      %v299 = vadd.f32 %v297, %v298
      %v300 = vsel %vm291, %v227, 0.0
      %v301 = vadd.f32 %v299, %v300
      %vm302 = vcmask 516096
      %v303 = vsel %vm302, %v282, 0.0
      %v304 = vsel %vm302, %v283, 0.0
      %v305 = vadd.f32 %v303, %v304
      %v306 = vsel %vm302, %v284, 0.0
      %v307 = vadd.f32 %v305, %v306
      %v308 = vsel %vm302, %v285, 0.0
      %v309 = vsel %vm302, %v286, 0.0
      %v310 = vadd.f32 %v308, %v309
      %v311 = vsel %vm302, %v287, 0.0
      %v312 = vadd.f32 %v310, %v311
      %vm313 = vcmask 519169
      %v314 = vsel %vm313, %v288, 0.0
      %v315 = vsel %vm313, %v289, 0.0
      %v316 = vadd.f32 %v314, %v315
      %v317 = vsel %vm313, %v290, 0.0
      %v318 = vadd.f32 %v316, %v317
      %v320 = vrot.slane %v318, 1
      %vm322 = vcmask 518144
      %v323 = vsel %vm322, %v320, 0.0
      %v324 = vrot.slane %v323, 4
      %v325 = vadd.f32 %v323, %v324
      %v326 = vrot.slane %v325, 2
      %v327 = vadd.f32 %v325, %v326
      %v328 = vrot.slane %v327, 1
      %v329 = vadd.f32 %v327, %v328
      %v330 = vsel %vm291, %v296, 0.0
      %331 = vadd.xlane.f32.xlu0 %v330
      %v332 = vpop.xlane.xlu0 %331
      %vm333 = vcmask 1024
      %334 = vst.msk [vmem:[%s161] sm:$0x3] %vm333, %v332
      %v335 = vsel %vm291, %v301, 0.0
      %336 = vadd.xlane.f32.xlu0 %v335
      %v337 = vpop.xlane.xlu0 %336
      %338 = vst.msk [vmem:[%s161 + $0x2] sm:$0x3] %vm333, %v337
      %v339 = vsel %vm302, %v307, 0.0
      %340 = vadd.xlane.f32.xlu0 %v339
      %v341 = vpop.xlane.xlu0 %340
      %vm342 = vcmask 0
      %343 = vst.msk [vmem:[%s161 + $0x4] sm:$0x1] %vm342, %v341
      %vm344 = vcmask 523264
      %v345 = vsel %vm344, %v329, 0.0
      %346 = vadd.xlane.f32.xlu0 %v345
      %v347 = vpop.xlane.xlu0 %346
      %348 = vst.msk [vmem:[%s161 + $0x5] sm:$0x1] %vm342, %v347
      %v349 = vsel %vm302, %v312, 0.0
      %350 = vadd.xlane.f32.xlu0 %v349
      %v351 = vpop.xlane.xlu0 %350
      %352 = vst.msk [vmem:[%s161 + $0x6] sm:$0x1] %vm342, %v351
      %353 = vst.msk [vmem:[%s161 + $0x7] sm:$0x1] %vm342, 0.0
      %p354 = scmp.lt.s32.totalorder %s13, 1
      %s355 = scalar_select %p354, %s13, 1
      %s356 = smul.addr %s355, 8
      %s357 = scalar_lea.vmem %s2, %s356
      // Predicated region
      $region29: #{_device_loss.1} parent=27 // pred_check
        %p358 = pneg %p83
      $region30: #{_device_loss.1} parent=27 // pred_check_branch
        %360 = sbr.rel (%p358) target = $region32
      $region31: #{_device_loss.1} parent=27 // pred_region
        _
      $region32: #{_device_loss.1} parent=27 // pred_fallthru
        _
    $region28: #{_device_loss.1} parent=5 // pred_fallthru
      _
    %p361 = scmp.le.s32.totalorder 2, %s8
    // Predicated region
    $region33: #{_device_loss.1} parent=5 // pred_check
      %p362 = pneg %p361
    $region34: #{_device_loss.1} parent=5 // pred_check_branch
      %364 = sbr.rel (%p362) target = $region36
    $region35: #{_device_loss.1} parent=5 // pred_region
      %s365 = ssub.s32 %s8, 2
      // Predicated region
      $region37: #{_device_loss.1} parent=35 // pred_check
        %p366 = pneg %p89
      $region38: #{_device_loss.1} parent=35 // pred_check_branch
        %368 = sbr.rel (%p366) target = $region40
      $region39: #{_device_loss.1} parent=35 // pred_region
        %p369 = scmp.lt.s32.totalorder %s14, 1
        %s370 = scalar_select %p369, %s14, 1
        %s371 = smul.addr %s370, 8
        %s372 = scalar_lea.vmem %s2, %s371
      $region40: #{_device_loss.1} parent=35 // pred_fallthru
        _
    $region36: #{_device_loss.1} parent=5 // pred_fallthru
      _
  $region6: #{_device_loss.1} parent=0 // loop_footer
    %s12 = sadd.s32 1, %s8
  $region7: #{_device_loss.1} parent=0 // loop_footer_branch
    %7 = sbr.rel target = $region3
  $region8: #{_device_loss.1} parent=0 // loop_exit
    _

</llo_original>
